<compile_context>
chip_gen: v5e
topology: v5e:2x2
jax: 0.10.0
libtpu: 0.0.40
codegen_flags: <defaults>
</compile_context>

<pallas_src>
import jax
import jax.numpy as jnp
from jax.experimental import pallas as pl
from jax.experimental.pallas import tpu as pltpu

LANE = 128


def _round_up(n: int, m: int) -> int:
    return ((n + m - 1) // m) * m


def actor_sac_fwd_kernel(x_ref, w1_ref, b1_ref, w2_ref, b2_ref, w3_ref, b3_ref, o_ref):
    # enc_s: Linear -> ReLU -> Linear  (build_mlp drops the trailing ReLU)
    x = x_ref[...].astype(jnp.bfloat16)
    h1 = jnp.dot(x, w1_ref[...], preferred_element_type=jnp.float32) + b1_ref[...]
    h1 = jnp.maximum(h1, 0.0)
    h2 = jnp.dot(h1.astype(jnp.bfloat16), w2_ref[...],
                 preferred_element_type=jnp.float32) + b2_ref[...]
    # dec_a_avg: single Linear, then tanh
    a = jnp.dot(h2.astype(jnp.bfloat16), w3_ref[...],
                preferred_element_type=jnp.float32) + b3_ref[...]
    o_ref[...] = jnp.tanh(a).astype(o_ref.dtype)


def actor_sac_forward(state, packed_params, action_dim, *, tile_b=512):
    """state: [B, state_dim] f32. packed_params: output of pack_params()."""
    w1, b1, w2, b2, w3, b3 = packed_params
    B, S = state.shape
    D1p, D2p, Ap = w1.shape[1], w2.shape[1], w3.shape[1]

    # Batch tile: multiple of 8 sublanes, capped at tile_b; pad B up to a multiple.
    TB = _round_up(min(tile_b, _round_up(B, 8)), 8)
    Bp = _round_up(B, TB)
    if Bp != B:
        state = jnp.pad(state, ((0, Bp - B), (0, 0)))
    grid = (Bp // TB,)

    flops = 2 * Bp * (S * D1p + D1p * D2p + D2p * Ap)
    bytes_accessed = (
        Bp * S * 4                                  # state read (f32)
        + Bp * Ap * 4                               # output write (f32, lane-dense)
        + sum(int(a.size) * a.dtype.itemsize for a in packed_params)
    )
    cost = pl.CostEstimate(flops=flops, transcendentals=Bp * Ap,
                           bytes_accessed=bytes_accessed)

    out = pl.pallas_call(
        actor_sac_fwd_kernel,
        out_shape=jax.ShapeDtypeStruct((Bp, Ap), jnp.float32),
        grid=grid,
        in_specs=[
            # state tile: pipelined over the batch grid axis.
            pl.BlockSpec((TB, S), lambda i: (i, 0)),
            # weights / biases: constant block index -> DMA'd once, stay resident.
            pl.BlockSpec(w1.shape, lambda i: (0, 0)),
            pl.BlockSpec(b1.shape, lambda i: (0, 0)),
            pl.BlockSpec(w2.shape, lambda i: (0, 0)),
            pl.BlockSpec(b2.shape, lambda i: (0, 0)),
            pl.BlockSpec(w3.shape, lambda i: (0, 0)),
            pl.BlockSpec(b3.shape, lambda i: (0, 0)),
        ],
        # Ap is a multiple of 128 -> unmasked, lane-dense stores.
        out_specs=pl.BlockSpec((TB, Ap), lambda i: (i, 0)),
        compiler_params=pltpu.CompilerParams(
            dimension_semantics=("parallel",),  # v7x: shard batch tiles across both TCs
        ),
        cost_estimate=cost,
    )(state, w1, b1, w2, b2, w3, b3)

    # Drop padded batch rows and padded action columns.
    return out[:B, :action_dim]


def init_params(key, state_dim, dims, action_dim):
    """Deterministic synthetic parameters (PyTorch-Linear-like uniform init),
    stored as [in_features, out_features] / [1, out_features]."""
    def linear(key, fan_in, fan_out):
        kw, kb = jax.random.split(key)
        bound = 1.0 / (fan_in ** 0.5)
        w = jax.random.uniform(kw, (fan_in, fan_out), jnp.float32, -bound, bound)
        b = jax.random.uniform(kb, (1, fan_out), jnp.float32, -bound, bound)
        return w, b

    k1, k2, k3 = jax.random.split(key, 3)
    w1, b1 = linear(k1, state_dim, dims[0])
    w2, b2 = linear(k2, dims[0], dims[1])
    w3, b3 = linear(k3, dims[1], action_dim)
    return {"w1": w1, "b1": b1, "w2": w2, "b2": b2, "w3": w3, "b3": b3}


def _pad2(a, rows, cols, dtype):
    r, c = a.shape
    return jnp.pad(a, ((0, rows - r), (0, cols - c))).astype(dtype)


def pack_params(params):
    """One-time pack: zero-pad hidden/action dims to multiples of 128, cast
    weights to bf16 (biases stay f32). Zero padding preserves the math exactly;
    the extra action columns are tanh(0)=0 and sliced off in the wrapper."""
    w1, b1, w2, b2, w3, b3 = (params[k] for k in ("w1", "b1", "w2", "b2", "w3", "b3"))
    S, D1 = w1.shape
    D2 = w2.shape[1]
    A = w3.shape[1]
    D1p, D2p, Ap = _round_up(D1, LANE), _round_up(D2, LANE), _round_up(A, LANE)
    return (
        _pad2(w1, S,   D1p, jnp.bfloat16),  # keep K = state_dim native (narrow input)
        _pad2(b1, 1,   D1p, jnp.float32),
        _pad2(w2, D1p, D2p, jnp.bfloat16),
        _pad2(b2, 1,   D2p, jnp.float32),
        _pad2(w3, D2p, Ap,  jnp.bfloat16),
        _pad2(b3, 1,   Ap,  jnp.float32),
    )


def actor_sac_forward_ref_f32(state, params):
    h1 = jnp.maximum(state @ params["w1"] + params["b1"], 0.0)
    h2 = h1 @ params["w2"] + params["b2"]
    return jnp.tanh(h2 @ params["w3"] + params["b3"])


def actor_sac_forward_ref_bf16(state, packed_params, action_dim):
    """Reference applying the same bf16-input / f32-accumulate scheme as the kernel."""
    w1, b1, w2, b2, w3, b3 = packed_params
    x = state.astype(jnp.bfloat16)
    h1 = jnp.maximum(jnp.dot(x, w1, preferred_element_type=jnp.float32) + b1, 0.0)
    h2 = jnp.dot(h1.astype(jnp.bfloat16), w2, preferred_element_type=jnp.float32) + b2
    a = jnp.dot(h2.astype(jnp.bfloat16), w3, preferred_element_type=jnp.float32) + b3
    return jnp.tanh(a)[:, :action_dim]


if __name__ == "__main__":
    # Small shapes consistent with the module; batch chosen to exercise
    # multiple grid steps plus batch-row padding (200 -> 256 with TB=64).
    batch, state_dim, dims, action_dim = 200, 16, (32, 32), 4

    key = jax.random.PRNGKey(0)
    k_params, k_state = jax.random.split(key)
    params = init_params(k_params, state_dim, dims, action_dim)
    packed = pack_params(params)
    state = jax.random.normal(k_state, (batch, state_dim), jnp.float32)

    out = actor_sac_forward(state, packed, action_dim, tile_b=64)
    out = jax.block_until_ready(out)
    assert out.shape == (batch, action_dim)

    ref_bf16 = jax.block_until_ready(actor_sac_forward_ref_bf16(state, packed, action_dim))
    ref_f32 = jax.block_until_ready(actor_sac_forward_ref_f32(state, params))

    # Tight check against a reference using the same bf16/f32-acc scheme.
    assert jnp.allclose(out, ref_bf16, atol=1e-3, rtol=1e-3), \
        float(jnp.max(jnp.abs(out - ref_bf16)))
    # Looser end-to-end check against the pure-f32 reference (bf16 rounding).
    assert jnp.allclose(out, ref_f32, atol=5e-2, rtol=5e-2), \
        float(jnp.max(jnp.abs(out - ref_f32)))

    print("KERNEL_OK")
</pallas_src>

<mosaic_0001>
module attributes {stable_mosaic.version = 11 : i64} {
  func.func @actor_sac_fwd_kernel(%arg0: i32, %arg1: memref<64x16xf32, #tpu.memory_space<vmem>>, %arg2: memref<16x128xbf16, #tpu.memory_space<vmem>>, %arg3: memref<1x128xf32, #tpu.memory_space<vmem>>, %arg4: memref<128x128xbf16, #tpu.memory_space<vmem>>, %arg5: memref<1x128xf32, #tpu.memory_space<vmem>>, %arg6: memref<128x128xbf16, #tpu.memory_space<vmem>>, %arg7: memref<1x128xf32, #tpu.memory_space<vmem>>, %arg8: memref<64x128xf32, #tpu.memory_space<vmem>>) attributes {dimension_semantics = [#tpu.dimension_semantics<parallel>], iteration_bounds = array<i64: 4>, scalar_prefetch = 0 : i64, scratch_operands = 0 : i64, tpu.core_type = #tpu.core_type<tc>, window_params = [{transform_indices = @transform_0, window_bounds = array<i64: 64, 16>}, {pipeline_mode = #tpu.pipeline_mode<synchronous>, transform_indices = @transform_1, window_bounds = array<i64: 16, 128>}, {pipeline_mode = #tpu.pipeline_mode<synchronous>, transform_indices = @transform_2, window_bounds = array<i64: 1, 128>}, {pipeline_mode = #tpu.pipeline_mode<synchronous>, transform_indices = @transform_3, window_bounds = array<i64: 128, 128>}, {pipeline_mode = #tpu.pipeline_mode<synchronous>, transform_indices = @transform_4, window_bounds = array<i64: 1, 128>}, {pipeline_mode = #tpu.pipeline_mode<synchronous>, transform_indices = @transform_5, window_bounds = array<i64: 128, 128>}, {pipeline_mode = #tpu.pipeline_mode<synchronous>, transform_indices = @transform_6, window_bounds = array<i64: 1, 128>}, {transform_indices = @transform_7, window_bounds = array<i64: 64, 128>}]} {
    %c0 = arith.constant 0 : index
    %c0_0 = arith.constant 0 : index
    %0 = vector.load %arg1[%c0, %c0_0] : memref<64x16xf32, #tpu.memory_space<vmem>>, vector<64x16xf32>
    %1 = arith.truncf %0 : vector<64x16xf32> to vector<64x16xbf16>
    %c0_1 = arith.constant 0 : index
    %c0_2 = arith.constant 0 : index
    %2 = vector.load %arg2[%c0_1, %c0_2] : memref<16x128xbf16, #tpu.memory_space<vmem>>, vector<16x128xbf16>
    %cst = arith.constant dense<0.000000e+00> : vector<64x128xf32>
    %3 = tpu.matmul %1, %2, %cst {dimension_numbers = #tpu.dot_dimension_numbers<[1], [0], [0], [1], [0, 0, 1, 1], [], []>} : vector<64x16xbf16>, vector<16x128xbf16>, vector<64x128xf32> -> vector<64x128xf32>
    %c0_3 = arith.constant 0 : index
    %c0_4 = arith.constant 0 : index
    %4 = vector.load %arg3[%c0_3, %c0_4] : memref<1x128xf32, #tpu.memory_space<vmem>>, vector<1x128xf32>
    %5 = vector.broadcast %4 : vector<1x128xf32> to vector<64x128xf32>
    %6 = arith.addf %3, %5 : vector<64x128xf32>
    %cst_5 = arith.constant 0.000000e+00 : f32
    %7 = vector.broadcast %cst_5 : f32 to vector<64x128xf32>
    %8 = arith.maximumf %6, %7 : vector<64x128xf32>
    %9 = arith.truncf %8 : vector<64x128xf32> to vector<64x128xbf16>
    %c0_6 = arith.constant 0 : index
    %c0_7 = arith.constant 0 : index
    %10 = vector.load %arg4[%c0_6, %c0_7] : memref<128x128xbf16, #tpu.memory_space<vmem>>, vector<128x128xbf16>
    %cst_8 = arith.constant dense<0.000000e+00> : vector<64x128xf32>
    %11 = tpu.matmul %9, %10, %cst_8 {dimension_numbers = #tpu.dot_dimension_numbers<[1], [0], [0], [1], [0, 0, 1, 1], [], []>} : vector<64x128xbf16>, vector<128x128xbf16>, vector<64x128xf32> -> vector<64x128xf32>
    %c0_9 = arith.constant 0 : index
    %c0_10 = arith.constant 0 : index
    %12 = vector.load %arg5[%c0_9, %c0_10] : memref<1x128xf32, #tpu.memory_space<vmem>>, vector<1x128xf32>
    %13 = vector.broadcast %12 : vector<1x128xf32> to vector<64x128xf32>
    %14 = arith.addf %11, %13 : vector<64x128xf32>
    %15 = arith.truncf %14 : vector<64x128xf32> to vector<64x128xbf16>
    %c0_11 = arith.constant 0 : index
    %c0_12 = arith.constant 0 : index
    %16 = vector.load %arg6[%c0_11, %c0_12] : memref<128x128xbf16, #tpu.memory_space<vmem>>, vector<128x128xbf16>
    %cst_13 = arith.constant dense<0.000000e+00> : vector<64x128xf32>
    %17 = tpu.matmul %15, %16, %cst_13 {dimension_numbers = #tpu.dot_dimension_numbers<[1], [0], [0], [1], [0, 0, 1, 1], [], []>} : vector<64x128xbf16>, vector<128x128xbf16>, vector<64x128xf32> -> vector<64x128xf32>
    %c0_14 = arith.constant 0 : index
    %c0_15 = arith.constant 0 : index
    %18 = vector.load %arg7[%c0_14, %c0_15] : memref<1x128xf32, #tpu.memory_space<vmem>>, vector<1x128xf32>
    %19 = vector.broadcast %18 : vector<1x128xf32> to vector<64x128xf32>
    %20 = arith.addf %17, %19 : vector<64x128xf32>
    %21 = math.tanh %20 : vector<64x128xf32>
    %c0_16 = arith.constant 0 : index
    %c0_17 = arith.constant 0 : index
    %22 = vector.load %arg8[%c0_16, %c0_17] : memref<64x128xf32, #tpu.memory_space<vmem>>, vector<64x128xf32>
    tpu.vector_store %arg8[%c0_16, %c0_17], %21 {strides = array<i32>} : memref<64x128xf32, #tpu.memory_space<vmem>>, vector<64x128xf32>,
    return
  }
  func.func @transform_0(%arg0: i32) -> (i32, i32) {
    %c0_i32 = arith.constant 0 : i32
    %c0_i32_0 = arith.constant 0 : i32
    return %arg0, %c0_i32 : i32, i32
  }
  func.func @transform_1(%arg0: i32) -> (i32, i32) {
    %c0_i32 = arith.constant 0 : i32
    %c0_i32_0 = arith.constant 0 : i32
    %c0_i32_1 = arith.constant 0 : i32
    return %c0_i32, %c0_i32_0 : i32, i32
  }
  func.func @transform_2(%arg0: i32) -> (i32, i32) {
    %c0_i32 = arith.constant 0 : i32
    %c0_i32_0 = arith.constant 0 : i32
    %c0_i32_1 = arith.constant 0 : i32
    return %c0_i32, %c0_i32_0 : i32, i32
  }
  func.func @transform_3(%arg0: i32) -> (i32, i32) {
    %c0_i32 = arith.constant 0 : i32
    %c0_i32_0 = arith.constant 0 : i32
    %c0_i32_1 = arith.constant 0 : i32
    return %c0_i32, %c0_i32_0 : i32, i32
  }
  func.func @transform_4(%arg0: i32) -> (i32, i32) {
    %c0_i32 = arith.constant 0 : i32
    %c0_i32_0 = arith.constant 0 : i32
    %c0_i32_1 = arith.constant 0 : i32
    return %c0_i32, %c0_i32_0 : i32, i32
  }
  func.func @transform_5(%arg0: i32) -> (i32, i32) {
    %c0_i32 = arith.constant 0 : i32
    %c0_i32_0 = arith.constant 0 : i32
    %c0_i32_1 = arith.constant 0 : i32
    return %c0_i32, %c0_i32_0 : i32, i32
  }
  func.func @transform_6(%arg0: i32) -> (i32, i32) {
    %c0_i32 = arith.constant 0 : i32
    %c0_i32_0 = arith.constant 0 : i32
    %c0_i32_1 = arith.constant 0 : i32
    return %c0_i32, %c0_i32_0 : i32, i32
  }
  func.func @transform_7(%arg0: i32) -> (i32, i32) {
    %c0_i32 = arith.constant 0 : i32
    %c0_i32_0 = arith.constant 0 : i32
    return %arg0, %c0_i32 : i32, i32
  }
}

</mosaic_0001>

<llo_original>
// kernel: tpu_custom_call.1
$region0: #{tpu_custom_call.1}
  #allocation0 [shape = 'u32[]', space=smem, size = 0x4, offset = 0x4, fixed_abs, tag = 'smem constant byte address 0x4 - core index']
  #allocation1 [shape = 'u32[72,128]{1,0:T(1,128)}', space=vmem, size = 0x9000, scoped, tag = 'internal scratch']
  %s0 = inlined_call_operand.vmem [shape: f32[256,16], index: 0, kind: input, shape index: {}]
  %s1 = inlined_call_operand.vmem [shape: bf16[16,128], index: 1, kind: input, shape index: {}]
  %s2 = inlined_call_operand.vmem [shape: f32[1,128], index: 2, kind: input, shape index: {}]
  %s3 = inlined_call_operand.vmem [shape: bf16[128,128], index: 3, kind: input, shape index: {}]
  %s4 = inlined_call_operand.vmem [shape: f32[1,128], index: 4, kind: input, shape index: {}]
  %s5 = inlined_call_operand.vmem [shape: bf16[128,128], index: 5, kind: input, shape index: {}]
  %s6 = inlined_call_operand.vmem [shape: f32[1,128], index: 6, kind: input, shape index: {}]
  %s7 = inlined_call_operand.hbm [shape: f32[256,128], index: 7, kind: output, shape index: {}]
  %s8 = sld [smem:[#allocation0]]
  $region61: #{tpu_custom_call.1} parent=0
    _
  %s10 = ssub.s32 1, %s8
  %s11 = scalar_select 0, %s10, %s8
  $region1: #{tpu_custom_call.1} parent=0
    #allocation2 [shape = 'u8[65536]{0}', space=vmem, size = 0x10000, scoped, tag = 'output window, operand 0']
    #allocation3 [shape = 's32[2]{0}', space=sflag, size = 0x8, scoped, tag = 'scoped memory for tpu_custom_call.1']
    %12 = vsyncpa [#allocation3], 0
    %s13 = scalar_lea.sflag [#allocation3], 1
    %14 = vsyncpa %s13, 0
    loop: start=0, step=1, limit=6
    $region2: #{tpu_custom_call.1} parent=1 // loop_pre_header
      _
    $region3: #{tpu_custom_call.1} parent=1 // loop_header
      %s16 = sphi 0, %s20
      %p17 = scmp.ge.s32.totalorder %s16, 6
      %s26 = sphi 0, %s28
      %s29 = sphi 0, %s26
      %s30 = sphi 0, %s29
      %s46 = sphi 0, %s30
      %s50 = sphi 0, %s50
      %s52 = sphi 0, %s50
      %s53 = sphi 0, %s52
      %s67 = sphi 0, %s53
      %s71 = sphi 0, %s71
      %s73 = sphi 0, %s71
      %s74 = sphi 0, %s73
      %s88 = sphi 0, %s74
      %s92 = sphi 0, %s92
      %s94 = sphi 0, %s92
      %s95 = sphi 0, %s94
      %s109 = sphi 0, %s95
      %s113 = sphi 0, %s113
      %s115 = sphi 0, %s113
      %s116 = sphi 0, %s115
      %s130 = sphi 0, %s116
      %s134 = sphi 0, %s134
      %s136 = sphi 0, %s134
      %s137 = sphi 0, %s136
      %s151 = sphi 0, %s137
      %s155 = sphi 0, %s155
      %s157 = sphi 0, %s155
      %s158 = sphi 0, %s157
      %s172 = sphi 0, %s158
      %s178 = sphi 0, %s180
      %s181 = sphi 0, %s178
      %s182 = sphi 0, %s181
      %s198 = sphi 0, %s182
    $region4: #{tpu_custom_call.1} parent=1 // loop_header_branch
      %19 = sbr.rel (%p17) target = $region8
    $region5: #{tpu_custom_call.1} parent=1 // loop_body
      %s21 = ssub.s32 %s16, 1
      %s22 = ssub.s32 %s16, 2
      %s23 = sadd.s32 %s16, 1
      %s24 = ssub.s32 %s16, %s23
      %p25 = scmp.eq.s32.totalorder %s24, 0
      %s27 = sadd.s32 %s26, 1
      %s28 = scalar_select %p25, %s26, %s27
      %p31 = pneg %p25
      %p32 = scmp.eq.s32.totalorder %s16, 3
      %p33 = por %p31, %p32
      %p34 = scmp.ne.s32.totalorder %s26, %s29
      %p35 = scmp.eq.s32.totalorder %s16, 0
      %p36 = por %p34, %p35
      %p37 = scmp.ne.s32.totalorder %s26, %s29
      %p38 = scmp.eq.s32.totalorder %s21, 3
      %p39 = por %p37, %p38
      %p40 = scmp.ne.s32.totalorder %s29, %s30
      %p41 = scmp.eq.s32.totalorder %s21, 0
      %p42 = por %p40, %p41
      %p43 = scmp.ne.s32.totalorder %s29, %s30
      %p44 = scmp.eq.s32.totalorder %s22, 3
      %p45 = por %p43, %p44
      %p47 = scmp.ne.s32.totalorder %s30, %s46
      %p48 = scmp.eq.s32.totalorder %s22, 0
      %p49 = por %p47, %p48
      %s51 = sadd.s32 %s50, 1
      %p54 = scmp.eq.s32.totalorder %s16, 3
      %p55 = scmp.ne.s32.totalorder %s50, %s52
      %p56 = scmp.eq.s32.totalorder %s16, 0
      %p57 = por %p55, %p56
      %p58 = scmp.ne.s32.totalorder %s50, %s52
      %p59 = scmp.eq.s32.totalorder %s21, 3
      %p60 = por %p58, %p59
      %p61 = scmp.ne.s32.totalorder %s52, %s53
      %p62 = scmp.eq.s32.totalorder %s21, 0
      %p63 = por %p61, %p62
      %p64 = scmp.ne.s32.totalorder %s52, %s53
      %p65 = scmp.eq.s32.totalorder %s22, 3
      %p66 = por %p64, %p65
      %p68 = scmp.ne.s32.totalorder %s53, %s67
      %p69 = scmp.eq.s32.totalorder %s22, 0
      %p70 = por %p68, %p69
      %s72 = sadd.s32 %s71, 1
      %p75 = scmp.eq.s32.totalorder %s16, 3
      %p76 = scmp.ne.s32.totalorder %s71, %s73
      %p77 = scmp.eq.s32.totalorder %s16, 0
      %p78 = por %p76, %p77
      %p79 = scmp.ne.s32.totalorder %s71, %s73
      %p80 = scmp.eq.s32.totalorder %s21, 3
      %p81 = por %p79, %p80
      %p82 = scmp.ne.s32.totalorder %s73, %s74
      %p83 = scmp.eq.s32.totalorder %s21, 0
      %p84 = por %p82, %p83
      %p85 = scmp.ne.s32.totalorder %s73, %s74
      %p86 = scmp.eq.s32.totalorder %s22, 3
      %p87 = por %p85, %p86
      %p89 = scmp.ne.s32.totalorder %s74, %s88
      %p90 = scmp.eq.s32.totalorder %s22, 0
      %p91 = por %p89, %p90
      %s93 = sadd.s32 %s92, 1
      %p96 = scmp.eq.s32.totalorder %s16, 3
      %p97 = scmp.ne.s32.totalorder %s92, %s94
      %p98 = scmp.eq.s32.totalorder %s16, 0
      %p99 = por %p97, %p98
      %p100 = scmp.ne.s32.totalorder %s92, %s94
      %p101 = scmp.eq.s32.totalorder %s21, 3
      %p102 = por %p100, %p101
      %p103 = scmp.ne.s32.totalorder %s94, %s95
      %p104 = scmp.eq.s32.totalorder %s21, 0
      %p105 = por %p103, %p104
      %p106 = scmp.ne.s32.totalorder %s94, %s95
      %p107 = scmp.eq.s32.totalorder %s22, 3
      %p108 = por %p106, %p107
      %p110 = scmp.ne.s32.totalorder %s95, %s109
      %p111 = scmp.eq.s32.totalorder %s22, 0
      %p112 = por %p110, %p111
      %s114 = sadd.s32 %s113, 1
      %p117 = scmp.eq.s32.totalorder %s16, 3
      %p118 = scmp.ne.s32.totalorder %s113, %s115
      %p119 = scmp.eq.s32.totalorder %s16, 0
      %p120 = por %p118, %p119
      %p121 = scmp.ne.s32.totalorder %s113, %s115
      %p122 = scmp.eq.s32.totalorder %s21, 3
      %p123 = por %p121, %p122
      %p124 = scmp.ne.s32.totalorder %s115, %s116
      %p125 = scmp.eq.s32.totalorder %s21, 0
      %p126 = por %p124, %p125
      %p127 = scmp.ne.s32.totalorder %s115, %s116
      %p128 = scmp.eq.s32.totalorder %s22, 3
      %p129 = por %p127, %p128
      %p131 = scmp.ne.s32.totalorder %s116, %s130
      %p132 = scmp.eq.s32.totalorder %s22, 0
      %p133 = por %p131, %p132
      %s135 = sadd.s32 %s134, 1
      %p138 = scmp.eq.s32.totalorder %s16, 3
      %p139 = scmp.ne.s32.totalorder %s134, %s136
      %p140 = scmp.eq.s32.totalorder %s16, 0
      %p141 = por %p139, %p140
      %p142 = scmp.ne.s32.totalorder %s134, %s136
      %p143 = scmp.eq.s32.totalorder %s21, 3
      %p144 = por %p142, %p143
      %p145 = scmp.ne.s32.totalorder %s136, %s137
      %p146 = scmp.eq.s32.totalorder %s21, 0
      %p147 = por %p145, %p146
      %p148 = scmp.ne.s32.totalorder %s136, %s137
      %p149 = scmp.eq.s32.totalorder %s22, 3
      %p150 = por %p148, %p149
      %p152 = scmp.ne.s32.totalorder %s137, %s151
      %p153 = scmp.eq.s32.totalorder %s22, 0
      %p154 = por %p152, %p153
      %s156 = sadd.s32 %s155, 1
      %p159 = scmp.eq.s32.totalorder %s16, 3
      %p160 = scmp.ne.s32.totalorder %s155, %s157
      %p161 = scmp.eq.s32.totalorder %s16, 0
      %p162 = por %p160, %p161
      %p163 = scmp.ne.s32.totalorder %s155, %s157
      %p164 = scmp.eq.s32.totalorder %s21, 3
      %p165 = por %p163, %p164
      %p166 = scmp.ne.s32.totalorder %s157, %s158
      %p167 = scmp.eq.s32.totalorder %s21, 0
      %p168 = por %p166, %p167
      %p169 = scmp.ne.s32.totalorder %s157, %s158
      %p170 = scmp.eq.s32.totalorder %s22, 3
      %p171 = por %p169, %p170
      %p173 = scmp.ne.s32.totalorder %s158, %s172
      %p174 = scmp.eq.s32.totalorder %s22, 0
      %p175 = por %p173, %p174
      %s176 = ssub.s32 %s16, %s23
      %p177 = scmp.eq.s32.totalorder %s176, 0
      %s179 = sadd.s32 %s178, 1
      %s180 = scalar_select %p177, %s178, %s179
      %p183 = pneg %p177
      %p184 = scmp.eq.s32.totalorder %s16, 3
      %p185 = por %p183, %p184
      %p186 = scmp.ne.s32.totalorder %s178, %s181
      %p187 = scmp.eq.s32.totalorder %s16, 0
      %p188 = por %p186, %p187
      %p189 = scmp.ne.s32.totalorder %s178, %s181
      %p190 = scmp.eq.s32.totalorder %s21, 3
      %p191 = por %p189, %p190
      %p192 = scmp.ne.s32.totalorder %s181, %s182
      %p193 = scmp.eq.s32.totalorder %s21, 0
      %p194 = por %p192, %p193
      %p195 = scmp.ne.s32.totalorder %s181, %s182
      %p196 = scmp.eq.s32.totalorder %s22, 3
      %p197 = por %p195, %p196
      %p199 = scmp.ne.s32.totalorder %s182, %s198
      %p200 = scmp.eq.s32.totalorder %s22, 0
      %p201 = por %p199, %p200
      %p202 = scmp.le.s32.totalorder 1, %s16
      %p203 = scmp.lt.s32.totalorder %s16, 5
      %p204 = pnand %p202, %p203
      %p205 = pneg %p204
      // Predicated region
      $region9: #{tpu_custom_call.1} parent=5 // pred_check
        _
      $region10: #{tpu_custom_call.1} parent=5 // pred_check_branch
        %207 = sbr.rel (%p204) target = $region12
      $region11: #{tpu_custom_call.1} parent=5 // pred_region
        %s208 = ssub.s32 %s16, 1
        // Predicated region
        $region13: #{tpu_custom_call.1} parent=11 // pred_check
          %p209 = pneg %p63
        $region14: #{tpu_custom_call.1} parent=11 // pred_check_branch
          %211 = sbr.rel (%p209) target = $region16
        $region15: #{tpu_custom_call.1} parent=11 // pred_region
          _
        $region16: #{tpu_custom_call.1} parent=11 // pred_fallthru
          _
        // Predicated region
        $region17: #{tpu_custom_call.1} parent=11 // pred_check
          %p212 = pneg %p84
        $region18: #{tpu_custom_call.1} parent=11 // pred_check_branch
          %214 = sbr.rel (%p212) target = $region20
        $region19: #{tpu_custom_call.1} parent=11 // pred_region
          _
        $region20: #{tpu_custom_call.1} parent=11 // pred_fallthru
          _
        // Predicated region
        $region21: #{tpu_custom_call.1} parent=11 // pred_check
          %p215 = pneg %p105
        $region22: #{tpu_custom_call.1} parent=11 // pred_check_branch
          %217 = sbr.rel (%p215) target = $region24
        $region23: #{tpu_custom_call.1} parent=11 // pred_region
          _
        $region24: #{tpu_custom_call.1} parent=11 // pred_fallthru
          _
        // Predicated region
        $region25: #{tpu_custom_call.1} parent=11 // pred_check
          %p218 = pneg %p126
        $region26: #{tpu_custom_call.1} parent=11 // pred_check_branch
          %220 = sbr.rel (%p218) target = $region28
        $region27: #{tpu_custom_call.1} parent=11 // pred_region
          _
        $region28: #{tpu_custom_call.1} parent=11 // pred_fallthru
          _
        // Predicated region
        $region29: #{tpu_custom_call.1} parent=11 // pred_check
          %p221 = pneg %p147
        $region30: #{tpu_custom_call.1} parent=11 // pred_check_branch
          %223 = sbr.rel (%p221) target = $region32
        $region31: #{tpu_custom_call.1} parent=11 // pred_region
          _
        $region32: #{tpu_custom_call.1} parent=11 // pred_fallthru
          _
        // Predicated region
        $region33: #{tpu_custom_call.1} parent=11 // pred_check
          %p224 = pneg %p168
        $region34: #{tpu_custom_call.1} parent=11 // pred_check_branch
          %226 = sbr.rel (%p224) target = $region36
        $region35: #{tpu_custom_call.1} parent=11 // pred_region
          _
        $region36: #{tpu_custom_call.1} parent=11 // pred_fallthru
          _
      $region12: #{tpu_custom_call.1} parent=5 // pred_fallthru
        _
      %p227 = scmp.lt.s32.totalorder %s16, 4
      // Predicated region
      $region37: #{tpu_custom_call.1} parent=5 // pred_check
        %p228 = pneg %p227
      $region38: #{tpu_custom_call.1} parent=5 // pred_check_branch
        %230 = sbr.rel (%p228) target = $region40
      $region39: #{tpu_custom_call.1} parent=5 // pred_region
        // Predicated region
        $region41: #{tpu_custom_call.1} parent=39 // pred_check
          %p231 = pneg %p36
        $region42: #{tpu_custom_call.1} parent=39 // pred_check_branch
          %233 = sbr.rel (%p231) target = $region44
        $region43: #{tpu_custom_call.1} parent=39 // pred_region
          %s234 = smul.u32 8, %s16
          %p235 = scmp.lt.s32.totalorder %s234, 31
          %s236 = scalar_select %p235, %s234, 31
          %s237 = smul.addr %s236, 8
          %s238 = scalar_lea.vmem %s0, %s237
          %s239 = smul.u32 8, %s16
        $region44: #{tpu_custom_call.1} parent=39 // pred_fallthru
          _
      $region40: #{tpu_custom_call.1} parent=5 // pred_fallthru
        _
      %p240 = scmp.le.s32.totalorder 1, %s16
      %p241 = scmp.lt.s32.totalorder %s16, 5
      %p242 = pnand %p240, %p241
      %p243 = pneg %p242
      // Predicated region
      $region45: #{tpu_custom_call.1} parent=5 // pred_check
        _
      $region46: #{tpu_custom_call.1} parent=5 // pred_check_branch
        %245 = sbr.rel (%p242) target = $region48
      $region47: #{tpu_custom_call.1} parent=5 // pred_region
        %s246 = ssub.s32 %s16, 1
        %s247 = smul.u32 8, %s21
        %p248 = scmp.lt.s32.totalorder %s247, 31
        %s249 = scalar_select %p248, %s247, 31
        %s250 = smul.addr %s249, 8
        %s251 = scalar_lea.vmem %s0, %s250
        %p252 = pneg %p42
        %p253 = pneg %p39
        %p254 = pneg %p63
        %p255 = pneg %p60
        %p256 = pneg %p84
        %p257 = pneg %p81
        %p258 = pneg %p105
        %p259 = pneg %p102
        %p260 = pneg %p126
        %p261 = pneg %p123
        %p262 = pneg %p147
        %p263 = pneg %p144
        %p264 = pneg %p168
        %p265 = pneg %p165
        %p266 = pneg %p194
        %p267 = pneg %p191
        %s268 = sand.u32 %s181, 1
        %s269 = scalar_lea.sflag [#allocation3], %s268
        %s270 = sand.u32 %s181, 1
        %s271 = smul.addr %s270, 64
        %s272 = scalar_lea.vmem [#allocation2], %s271
        %s273 = smul.u32 8, %s21
        %p274 = scmp.lt.s32.totalorder %s273, 31
        %s275 = scalar_select %p274, %s273, 31
        %s276 = smul.addr %s275, 8
        %s277 = scalar_lea.vmem %s0, %s276
        %s278 = smul.u32 8, %s21
        %s279 = smul.u32 8, %s21
        %v281 = vld [vmem:[%s277] sm:$0xff]
        %v282 = vld [vmem:[%s277 + $0x8] sm:$0xff]
        %v283 = vld [vmem:[%s277 + $0x10] sm:$0xff]
        %v284 = vld [vmem:[%s277 + $0x18] sm:$0xff]
        %v285 = vld [vmem:[%s277 + $0x20] sm:$0xff]
        %v286 = vld [vmem:[%s277 + $0x28] sm:$0xff]
        %v287 = vld [vmem:[%s277 + $0x30] sm:$0xff]
        %v288 = vld [vmem:[%s277 + $0x38] sm:$0xff]
        %v289 = vpack.c.bf16 %v282, %v281
        %v290 = vpack.c.bf16 %v284, %v283
        %v291 = vpack.c.bf16 %v286, %v285
        %v292 = vpack.c.bf16 %v288, %v287
        %v293 = vld [vmem:[%s1] sm:$0xf]
        %v294 = vld [vmem:[%s1 + $0x4] sm:$0xf]
        %v295 = vld [vmem:[%s2] sm:$0x1]
        %v297 = vperm.slane %v295, 0
        %v301 = vunpack.c.l.b16 %v293
        %v302 = vunpack.c.l.b16 %v294
        %v303 = vpack.c.b16 %v302, %v301
        %vm305 = vcmask 130048
        %v307 = vsel %vm305, %v289, 0
        %v310 = vsel %vm305, %v290, 0
        %v313 = vsel %vm305, %v291, 0
        %v316 = vsel %vm305, %v292, 0
        %318 = vmatpush.bf16.msra.mxu0 0
        %319 = vmatpush.bf16.msra.mxu0 0
        %320 = vmatpush.bf16.msra.mxu0 0
        %321 = vmatpush.bf16.msra.mxu0 0
        %322 = vmatpush.bf16.msra.mxu0 0
        %323 = vmatpush.bf16.msra.mxu0 0
        %324 = vmatpush.bf16.msra.mxu0 0
        %325 = vmatpush.bf16.msra.mxu0 %v303
        %326 = vmatmul.bf16.gmra.mxu0 %v307
        %v327 = vpop.f32.mrf.mxu0
        %v328 = vadd.f32 %v297, %v327
        %v329 = vpop.f32.mrf.mxu0
        %v330 = vadd.f32 %v297, %v329
        %331 = vmatmul.bf16.gmra.mxu0 %v310
        %v332 = vpop.f32.mrf.mxu0
        %v333 = vadd.f32 %v297, %v332
        %v334 = vpop.f32.mrf.mxu0
        %v335 = vadd.f32 %v297, %v334
        %336 = vmatmul.bf16.gmra.mxu0 %v313
        %v337 = vpop.f32.mrf.mxu0
        %v338 = vadd.f32 %v297, %v337
        %v339 = vpop.f32.mrf.mxu0
        %v340 = vadd.f32 %v297, %v339
        %341 = vmatmul.bf16.gmra.mxu0 %v316
        %v342 = vpop.f32.mrf.mxu0
        %v343 = vadd.f32 %v297, %v342
        %v344 = vpop.f32.mrf.mxu0
        %v345 = vadd.f32 %v297, %v344
        %346 = vdwg.mxu0
        %v347 = vmax.f32 %v328, 0.0
        %v348 = vmax.f32 %v330, 0.0
        %v349 = vmax.f32 %v333, 0.0
        %v350 = vmax.f32 %v335, 0.0
        %v351 = vmax.f32 %v338, 0.0
        %v352 = vmax.f32 %v340, 0.0
        %v353 = vmax.f32 %v343, 0.0
        %v354 = vmax.f32 %v345, 0.0
        %v355 = vpack.c.bf16 %v348, %v347
        %v356 = vpack.c.bf16 %v350, %v349
        %v357 = vpack.c.bf16 %v352, %v351
        %v358 = vpack.c.bf16 %v354, %v353
        %v359 = vld [vmem:[%s3] sm:$0xf]
        %v360 = vld [vmem:[%s3 + $0x4] sm:$0xf]
        %v361 = vld [vmem:[%s3 + $0x8] sm:$0xf]
        %v362 = vld [vmem:[%s3 + $0xc] sm:$0xf]
        %v363 = vld [vmem:[%s3 + $0x10] sm:$0xf]
        %v364 = vld [vmem:[%s3 + $0x14] sm:$0xf]
        %v365 = vld [vmem:[%s3 + $0x18] sm:$0xf]
        %v366 = vld [vmem:[%s3 + $0x1c] sm:$0xf]
        %v367 = vld [vmem:[%s3 + $0x20] sm:$0xf]
        %v368 = vld [vmem:[%s3 + $0x24] sm:$0xf]
        %v369 = vld [vmem:[%s3 + $0x28] sm:$0xf]
        %v370 = vld [vmem:[%s3 + $0x2c] sm:$0xf]
        %v371 = vld [vmem:[%s3 + $0x30] sm:$0xf]
        %v372 = vld [vmem:[%s3 + $0x34] sm:$0xf]
        %v373 = vld [vmem:[%s3 + $0x38] sm:$0xf]
        %v374 = vld [vmem:[%s3 + $0x3c] sm:$0xf]
        %v375 = vld [vmem:[%s4] sm:$0x1]
        %v377 = vperm.slane %v375, 0
        %v395 = vunpack.c.l.b16 %v359
        %v396 = vunpack.c.l.b16 %v360
        %v397 = vunpack.c.l.b16 %v361
        %v398 = vunpack.c.l.b16 %v362
        %v399 = vunpack.c.l.b16 %v363
        %v400 = vunpack.c.l.b16 %v364
        %v401 = vunpack.c.l.b16 %v365
        %v402 = vunpack.c.l.b16 %v366
        %v403 = vunpack.c.l.b16 %v367
        %v404 = vunpack.c.l.b16 %v368
        %v405 = vunpack.c.l.b16 %v369
        %v406 = vunpack.c.l.b16 %v370
        %v407 = vunpack.c.l.b16 %v371
        %v408 = vunpack.c.l.b16 %v372
        %v409 = vunpack.c.l.b16 %v373
        %v410 = vunpack.c.l.b16 %v374
        %v411 = vpack.c.b16 %v396, %v395
        %v412 = vpack.c.b16 %v398, %v397
        %v413 = vpack.c.b16 %v400, %v399
        %v414 = vpack.c.b16 %v402, %v401
        %v415 = vpack.c.b16 %v404, %v403
        %v416 = vpack.c.b16 %v406, %v405
        %v417 = vpack.c.b16 %v408, %v407
        %v418 = vpack.c.b16 %v410, %v409
        %427 = vmatpush.bf16.msra.mxu0 %v418
        %428 = vmatpush.bf16.msra.mxu0 %v417
        %429 = vmatpush.bf16.msra.mxu0 %v416
        %430 = vmatpush.bf16.msra.mxu0 %v415
        %431 = vmatpush.bf16.msra.mxu0 %v414
        %432 = vmatpush.bf16.msra.mxu0 %v413
        %433 = vmatpush.bf16.msra.mxu0 %v412
        %434 = vmatpush.bf16.msra.mxu0 %v411
        %435 = vmatmul.bf16.gmra.mxu0 %v355
        %v436 = vpop.f32.mrf.mxu0
        %v437 = vadd.f32 %v377, %v436
        %v438 = vpop.f32.mrf.mxu0
        %v439 = vadd.f32 %v377, %v438
        %440 = vmatmul.bf16.gmra.mxu0 %v356
        %v441 = vpop.f32.mrf.mxu0
        %v442 = vadd.f32 %v377, %v441
        %v443 = vpop.f32.mrf.mxu0
        %v444 = vadd.f32 %v377, %v443
        %445 = vmatmul.bf16.gmra.mxu0 %v357
        %v446 = vpop.f32.mrf.mxu0
        %v447 = vadd.f32 %v377, %v446
        %v448 = vpop.f32.mrf.mxu0
        %v449 = vadd.f32 %v377, %v448
        %450 = vmatmul.bf16.gmra.mxu0 %v358
        %v451 = vpop.f32.mrf.mxu0
        %v452 = vadd.f32 %v377, %v451
        %v453 = vpop.f32.mrf.mxu0
        %v454 = vadd.f32 %v377, %v453
        %455 = vdwg.mxu0
        %v456 = vpack.c.bf16 %v439, %v437
        %v457 = vpack.c.bf16 %v444, %v442
        %v458 = vpack.c.bf16 %v449, %v447
        %v459 = vpack.c.bf16 %v454, %v452
        %v460 = vld [vmem:[%s5] sm:$0xf]
        %v461 = vld [vmem:[%s5 + $0x4] sm:$0xf]
        %v462 = vld [vmem:[%s5 + $0x8] sm:$0xf]
        %v463 = vld [vmem:[%s5 + $0xc] sm:$0xf]
        %v464 = vld [vmem:[%s5 + $0x10] sm:$0xf]
        %v465 = vld [vmem:[%s5 + $0x14] sm:$0xf]
        %v466 = vld [vmem:[%s5 + $0x18] sm:$0xf]
        %v467 = vld [vmem:[%s5 + $0x1c] sm:$0xf]
        %v468 = vld [vmem:[%s5 + $0x20] sm:$0xf]
        %v469 = vld [vmem:[%s5 + $0x24] sm:$0xf]
        %v470 = vld [vmem:[%s5 + $0x28] sm:$0xf]
        %v471 = vld [vmem:[%s5 + $0x2c] sm:$0xf]
        %v472 = vld [vmem:[%s5 + $0x30] sm:$0xf]
        %v473 = vld [vmem:[%s5 + $0x34] sm:$0xf]
        %v474 = vld [vmem:[%s5 + $0x38] sm:$0xf]
        %v475 = vld [vmem:[%s5 + $0x3c] sm:$0xf]
        %v476 = vld [vmem:[%s6] sm:$0x1]
        %v478 = vperm.slane %v476, 0
        %v496 = vunpack.c.l.b16 %v460
        %v497 = vunpack.c.l.b16 %v461
        %v498 = vunpack.c.l.b16 %v462
        %v499 = vunpack.c.l.b16 %v463
        %v500 = vunpack.c.l.b16 %v464
        %v501 = vunpack.c.l.b16 %v465
        %v502 = vunpack.c.l.b16 %v466
        %v503 = vunpack.c.l.b16 %v467
        %v504 = vunpack.c.l.b16 %v468
        %v505 = vunpack.c.l.b16 %v469
        %v506 = vunpack.c.l.b16 %v470
        %v507 = vunpack.c.l.b16 %v471
        %v508 = vunpack.c.l.b16 %v472
        %v509 = vunpack.c.l.b16 %v473
        %v510 = vunpack.c.l.b16 %v474
        %v511 = vunpack.c.l.b16 %v475
        %v512 = vpack.c.b16 %v497, %v496
        %v513 = vpack.c.b16 %v499, %v498
        %v514 = vpack.c.b16 %v501, %v500
        %v515 = vpack.c.b16 %v503, %v502
        %v516 = vpack.c.b16 %v505, %v504
        %v517 = vpack.c.b16 %v507, %v506
        %v518 = vpack.c.b16 %v509, %v508
        %v519 = vpack.c.b16 %v511, %v510
        %528 = vmatpush.bf16.msra.mxu0 %v519
        %529 = vmatpush.bf16.msra.mxu0 %v518
        %530 = vmatpush.bf16.msra.mxu0 %v517
        %531 = vmatpush.bf16.msra.mxu0 %v516
        %532 = vmatpush.bf16.msra.mxu0 %v515
        %533 = vmatpush.bf16.msra.mxu0 %v514
        %534 = vmatpush.bf16.msra.mxu0 %v513
        %535 = vmatpush.bf16.msra.mxu0 %v512
        %536 = vmatmul.bf16.gmra.mxu0 %v456
        %v537 = vpop.f32.mrf.mxu0
        %v538 = vadd.f32 %v478, %v537
        %v539 = vpop.f32.mrf.mxu0
        %v540 = vadd.f32 %v478, %v539
        %541 = vmatmul.bf16.gmra.mxu0 %v457
        %v542 = vpop.f32.mrf.mxu0
        %v543 = vadd.f32 %v478, %v542
        %v544 = vpop.f32.mrf.mxu0
        %v545 = vadd.f32 %v478, %v544
        %546 = vmatmul.bf16.gmra.mxu0 %v458
        %v547 = vpop.f32.mrf.mxu0
        %v548 = vadd.f32 %v478, %v547
        %v549 = vpop.f32.mrf.mxu0
        %v550 = vadd.f32 %v478, %v549
        %551 = vmatmul.bf16.gmra.mxu0 %v459
        %v552 = vpop.f32.mrf.mxu0
        %v553 = vadd.f32 %v478, %v552
        %v554 = vpop.f32.mrf.mxu0
        %v555 = vadd.f32 %v478, %v554
        %556 = vdwg.mxu0
        %v557 = vtanh.pop %v538
        %v558 = vtanh.pop %v540
        %v559 = vtanh.pop %v543
        %v560 = vtanh.pop %v545
        %v561 = vtanh.pop %v548
        %v562 = vtanh.pop %v550
        %v563 = vtanh.pop %v553
        %v564 = vtanh.pop %v555
        %565 = vst [vmem:[%s272] sm:$0xff] %v557
        %566 = vst [vmem:[%s272 + $0x8] sm:$0xff] %v558
        %567 = vst [vmem:[%s272 + $0x10] sm:$0xff] %v559
        %568 = vst [vmem:[%s272 + $0x18] sm:$0xff] %v560
        %569 = vst [vmem:[%s272 + $0x20] sm:$0xff] %v561
        %570 = vst [vmem:[%s272 + $0x28] sm:$0xff] %v562
        %571 = vst [vmem:[%s272 + $0x30] sm:$0xff] %v563
        %572 = vst [vmem:[%s272 + $0x38] sm:$0xff] %v564
        %s573 = sand.u32 %s181, 1
        %s574 = scalar_lea.sflag [#allocation3], %s573
        %s575 = sand.u32 %s181, 1
        %s576 = smul.addr %s575, 64
        %s577 = scalar_lea.vmem [#allocation2], %s576
        // Predicated region
        $region49: #{tpu_custom_call.1} parent=47 // pred_check
          %p578 = pneg %p191
        $region50: #{tpu_custom_call.1} parent=47 // pred_check_branch
          %580 = sbr.rel (%p578) target = $region52
        $region51: #{tpu_custom_call.1} parent=47 // pred_region
          %s581 = smul.u32 8, %s21
          %583 = vsyncadd %s574, 0
          %s584 = smul.addr %s581, 8
          %s585 = scalar_lea.hbm %s7, %s584
          %s586 = sshll.u32 %s577, 4
          %s587 = int_to_ptr.vmem [resolvable:$true] %s586
          %s588 = sshll.u32 %s585, 4
          %s589 = int_to_ptr.hbm [resolvable:$true] %s588
          %594 = dma.vmem_to_hbm [thread:$0]  %s587, 1024, %s589, %s574, 128, 128, 8
        $region52: #{tpu_custom_call.1} parent=47 // pred_fallthru
          _
      $region48: #{tpu_custom_call.1} parent=5 // pred_fallthru
        _
      %p595 = scmp.le.s32.totalorder 2, %s16
      // Predicated region
      $region53: #{tpu_custom_call.1} parent=5 // pred_check
        %p596 = pneg %p595
      $region54: #{tpu_custom_call.1} parent=5 // pred_check_branch
        %598 = sbr.rel (%p596) target = $region56
      $region55: #{tpu_custom_call.1} parent=5 // pred_region
        %s599 = ssub.s32 %s16, 2
        // Predicated region
        $region57: #{tpu_custom_call.1} parent=55 // pred_check
          %p600 = pneg %p197
        $region58: #{tpu_custom_call.1} parent=55 // pred_check_branch
          %602 = sbr.rel (%p600) target = $region60
        $region59: #{tpu_custom_call.1} parent=55 // pred_region
          %s603 = sand.u32 %s182, 1
          %s604 = scalar_lea.sflag [#allocation3], %s603
          %s605 = sand.u32 %s182, 1
          %s606 = smul.addr %s605, 64
          %s607 = scalar_lea.vmem [#allocation2], %s606
          %609 = dma.done %s604, 1024
        $region60: #{tpu_custom_call.1} parent=55 // pred_fallthru
          _
      $region56: #{tpu_custom_call.1} parent=5 // pred_fallthru
        _
    $region6: #{tpu_custom_call.1} parent=1 // loop_footer
      %s20 = sadd.s32 1, %s16
    $region7: #{tpu_custom_call.1} parent=1 // loop_footer_branch
      %15 = sbr.rel target = $region3
    $region8: #{tpu_custom_call.1} parent=1 // loop_exit
      _
    %610 = vsyncpa [#allocation3], 1
    %s611 = scalar_lea.sflag [#allocation3], 1
    %612 = vsyncpa %s611, 1

</llo_original>
